<compile_context>
chip_gen: v7x
topology: tpu7x:2x2x1
jax: 0.10.0
libtpu: 0.0.40
codegen_flags: <defaults>
</compile_context>

<pallas_src>
import jax
import jax.numpy as jnp
from jax.experimental import pallas as pl
from jax.experimental.pallas import tpu as pltpu


def _vq_kernel(x_ref, et_ref, esq_ref, q_ref, ind_ref, sse_ref):
    """One grid step = one (batch, spatial-tile) slab in (C, tile) layout.

    x_ref   : (C, tile)   encoder activations (channels on sublanes, positions on lanes)
    et_ref  : (n_e, C)    codebook, transposed
    esq_ref : (n_e, 1)    precomputed ||e_j||^2 (f32)
    q_ref   : (C, tile)   nearest codebook vectors (out, x dtype)
    ind_ref : (1, tile)   nearest code indices (out, int32, lane-dense)
    sse_ref : (1, 1)      per-batch running sum of (q - x)^2 (out, f32)
    """
    t = pl.program_id(1)

    x_t = x_ref[...]                                  # (C, tile), native dtype
    et = et_ref[...]                                  # (n_e, C)
    n_e = et.shape[0]

    # dist[j, p] = ||e_j||^2 - 2 <e_j, x_p>     (||x_p||^2 dropped: per-column
    # constant, argmin over codes is invariant to it).
    xe = jax.lax.dot_general(
        et, x_t, dimension_numbers=(((1,), (0,)), ((), ())),
        preferred_element_type=jnp.float32)           # MXU, (n_e, tile)
    dist = esq_ref[...] - 2.0 * xe                    # (n_e, tile), f32

    # argmin over codes (sublane axis), first-match tie-break like torch.
    iota = jax.lax.broadcasted_iota(jnp.int32, dist.shape, 0)       # (n_e, tile)
    min_val = jnp.min(dist, axis=0, keepdims=True)                  # (1, tile)
    ind = jnp.min(jnp.where(dist == min_val, iota, n_e),
                  axis=0, keepdims=True)                            # (1, tile)
    ind_ref[...] = ind.astype(jnp.int32)

    # Gather codebook vectors via one-hot matmul (exact, MXU-friendly):
    #   q_t[c, p] = sum_j et[j, c] * one_hot[j, p]
    one_hot = (iota == ind).astype(et.dtype)                        # (n_e, tile)
    q_t = jax.lax.dot_general(
        et, one_hot, dimension_numbers=(((0,), (0,)), ((), ())),
        preferred_element_type=jnp.float32)                         # (C, tile)
    q_ref[...] = q_t.astype(q_ref.dtype)

    # Per-batch partial sum of squared error, accumulated over spatial tiles.
    diff = q_t - x_t.astype(jnp.float32)
    part = jnp.sum(diff * diff)

    @pl.when(t == 0)
    def _():
        sse_ref[...] = jnp.zeros_like(sse_ref)

    sse_ref[...] += part


def quantize_forward(x, embeddings, beta=0.25, tile_hw=1024):
    """Forward pass of `Quantize`.

    x          : (B, C, H, W) float
    embeddings : (C, n_e)     float codebook
    Returns (quantize, loss, embed_ind) matching the PyTorch module
    (embed_ind as int32 instead of int64).
    """
    B, C, H, W = x.shape
    n_e = embeddings.shape[1]
    HW = H * W

    # NCHW -> (B, C, H*W): pure reshape, no transpose / extra HBM traffic.
    x3 = x.reshape(B, C, HW)

    tile_hw = min(tile_hw, HW)
    if HW % tile_hw != 0:
        tile_hw = HW            # fall back to one full spatial row per batch
    T = HW // tile_hw

    # Loop-invariant codebook quantities, computed once in the wrapper.
    et = embeddings.T.astype(x.dtype)                                    # (n_e, C)
    esq = jnp.sum(embeddings.astype(jnp.float32) ** 2, axis=0)[:, None]  # (n_e, 1)

    # VMEM budget estimate: double-buffered x/q/ind blocks + codebook copies
    # + (n_e, tile) f32 intermediates (dist / one_hot / xe).
    itemsize = jnp.dtype(x.dtype).itemsize
    est = (4 * C * tile_hw * itemsize
           + 4 * tile_hw * 4
           + 2 * (n_e * C * itemsize + n_e * 4)
           + 4 * n_e * tile_hw * 4)
    vmem_limit = int(min(max(2 * est, 32 << 20), 64 << 20))

    q3, ind3, sse = pl.pallas_call(
        _vq_kernel,
        out_shape=(
            jax.ShapeDtypeStruct((B, C, HW), x.dtype),
            jax.ShapeDtypeStruct((B, 1, HW), jnp.int32),
            jax.ShapeDtypeStruct((B, 1, 1), jnp.float32),
        ),
        grid_spec=pltpu.PrefetchScalarGridSpec(
            num_scalar_prefetch=0,
            grid=(B, T),
            in_specs=[
                pl.BlockSpec((None, C, tile_hw), lambda b, t: (b, 0, t)),
                pl.BlockSpec((n_e, C), lambda b, t: (0, 0)),
                pl.BlockSpec((n_e, 1), lambda b, t: (0, 0)),
            ],
            out_specs=[
                pl.BlockSpec((None, C, tile_hw), lambda b, t: (b, 0, t)),
                pl.BlockSpec((None, 1, tile_hw), lambda b, t: (b, 0, t)),
                pl.BlockSpec((None, 1, 1), lambda b, t: (b, 0, 0)),
            ],
        ),
        compiler_params=pltpu.CompilerParams(
            # batch axis parallel (megacore / v7x dual-TC); spatial axis
            # arbitrary because the per-batch sse block accumulates across it.
            dimension_semantics=("parallel", "arbitrary"),
            vmem_limit_bytes=vmem_limit,
        ),
    )(x3, et, esq)

    # loss = mean((sg[q]-x)^2) + beta*mean((q-sg[x])^2); forward value is
    # (1+beta) * mean((q-x)^2) over all B*C*H*W elements.
    # TODO(synk): loss gradients w.r.t. x / embeddings need a custom_vjp on the
    # pallas_call; only the forward value (and the straight-through path on
    # `quantize`) is provided here.
    loss = (jnp.sum(sse) / jnp.float32(B * C * HW)) * (1.0 + beta)

    quantize_nchw = q3.reshape(B, C, H, W)
    embed_ind = ind3.reshape(B, H, W)

    # Straight-through estimator: forward value equals quantize_nchw exactly.
    quantize = x + jax.lax.stop_gradient(quantize_nchw - x)
    return quantize, loss, embed_ind


def _reference(x, embeddings, beta=0.25):
    """Pure-JAX reference mirroring the PyTorch forward."""
    B, C, H, W = x.shape
    flat = jnp.transpose(x, (0, 2, 3, 1)).reshape(-1, C)
    dist = (jnp.sum(flat**2, axis=1, keepdims=True)
            - 2.0 * flat @ embeddings
            + jnp.sum(embeddings**2, axis=0, keepdims=True))
    ind = jnp.argmin(dist, axis=1)
    q = embeddings.T[ind].reshape(B, H, W, C).transpose(0, 3, 1, 2)
    loss = jnp.mean((q - x) ** 2) * (1.0 + beta)
    return q, loss, ind.reshape(B, H, W)


if __name__ == "__main__":
    key = jax.random.PRNGKey(0)
    k_x, k_e = jax.random.split(key)

    B, C, H, W = 2, 8, 16, 16      # dim = e_dim = 8
    n_embed = 64
    beta = 0.25

    x = jax.random.normal(k_x, (B, C, H, W), dtype=jnp.float32)
    rand_range = 1.0 / n_embed
    embeddings = jax.random.uniform(
        k_e, (C, n_embed), minval=-rand_range, maxval=rand_range,
        dtype=jnp.float32)

    quantize, loss, embed_ind = quantize_forward(x, embeddings, beta=beta)
    jax.block_until_ready((quantize, loss, embed_ind))

    q_ref, loss_ref, ind_ref = _reference(x, embeddings, beta=beta)
    assert jnp.allclose(quantize, q_ref, atol=1e-5, rtol=1e-5)
    assert jnp.allclose(loss, loss_ref, atol=1e-5, rtol=1e-5)
    assert jnp.all(embed_ind == ind_ref.astype(jnp.int32))

    print("KERNEL_OK")
</pallas_src>

<mosaic_0001>
module attributes {stable_mosaic.version = 11 : i64} {
  func.func @_vq_kernel(%arg0: i32, %arg1: i32, %arg2: memref<1x8x256xf32, #tpu.memory_space<vmem>>, %arg3: memref<64x8xf32, #tpu.memory_space<vmem>>, %arg4: memref<64x1xf32, #tpu.memory_space<vmem>>, %arg5: memref<1x8x256xf32, #tpu.memory_space<vmem>>, %arg6: memref<1x1x256xi32, #tpu.memory_space<vmem>>, %arg7: memref<1x1x1xf32, #tpu.memory_space<vmem>>) attributes {dimension_semantics = [#tpu.dimension_semantics<parallel>, #tpu.dimension_semantics<arbitrary>], iteration_bounds = array<i64: 2, 1>, scalar_prefetch = 0 : i64, scratch_operands = 0 : i64, tpu.core_type = #tpu.core_type<tc>, window_params = [{transform_indices = @transform_0, window_bounds = array<i64: 1, 8, 256>}, {pipeline_mode = #tpu.pipeline_mode<synchronous>, transform_indices = @transform_1, window_bounds = array<i64: 64, 8>}, {pipeline_mode = #tpu.pipeline_mode<synchronous>, transform_indices = @transform_2, window_bounds = array<i64: 64, 1>}, {transform_indices = @transform_3, window_bounds = array<i64: 1, 8, 256>}, {transform_indices = @transform_4, window_bounds = array<i64: 1, 1, 256>}, {transform_indices = @transform_5, window_bounds = array<i64: 1, 1, 1>}]} {
    %c0 = arith.constant 0 : index
    %c0_0 = arith.constant 0 : index
    %c0_1 = arith.constant 0 : index
    %0 = vector.load %arg2[%c0, %c0_0, %c0_1] : memref<1x8x256xf32, #tpu.memory_space<vmem>>, vector<1x8x256xf32>
    %1 = vector.shape_cast %0 : vector<1x8x256xf32> to vector<8x256xf32>
    %c0_2 = arith.constant 0 : index
    %c0_3 = arith.constant 0 : index
    %2 = vector.load %arg3[%c0_2, %c0_3] : memref<64x8xf32, #tpu.memory_space<vmem>>, vector<64x8xf32>
    %cst = arith.constant dense<0.000000e+00> : vector<64x256xf32>
    %3 = tpu.matmul %2, %1, %cst {dimension_numbers = #tpu.dot_dimension_numbers<[1], [0], [0], [1], [0, 0, 1, 1], [], []>} : vector<64x8xf32>, vector<8x256xf32>, vector<64x256xf32> -> vector<64x256xf32>
    %c0_4 = arith.constant 0 : index
    %c0_5 = arith.constant 0 : index
    %4 = vector.load %arg4[%c0_4, %c0_5] : memref<64x1xf32, #tpu.memory_space<vmem>>, vector<64x1xf32>
    %cst_6 = arith.constant 2.000000e+00 : f32
    %5 = vector.broadcast %cst_6 : f32 to vector<64x256xf32>
    %6 = arith.mulf %5, %3 : vector<64x256xf32>
    %7 = vector.broadcast %4 : vector<64x1xf32> to vector<64x256xf32>
    %8 = arith.subf %7, %6 : vector<64x256xf32>
    %9 = tpu.iota {dimensions = array<i32: 0>} : vector<64x256xi32>
    %cst_7 = arith.constant dense<0x7F800000> : vector<256xf32>
    %10 = vector.multi_reduction <minimumf>, %8, %cst_7 [0] : vector<64x256xf32> to vector<256xf32>
    %11 = vector.shape_cast %10 : vector<256xf32> to vector<1x256xf32>
    %12 = vector.broadcast %11 : vector<1x256xf32> to vector<64x256xf32>
    %13 = arith.cmpf oeq, %8, %12 : vector<64x256xf32>
    %c64_i32 = arith.constant 64 : i32
    %14 = vector.broadcast %c64_i32 : i32 to vector<64x256xi32>
    %15 = arith.select %13, %9, %14 : vector<64x256xi1>, vector<64x256xi32>
    %cst_8 = arith.constant dense<2147483647> : vector<256xi32>
    %16 = vector.multi_reduction <minsi>, %15, %cst_8 [0] : vector<64x256xi32> to vector<256xi32>
    %17 = vector.shape_cast %16 : vector<256xi32> to vector<1x256xi32>
    %c0_9 = arith.constant 0 : index
    %c0_10 = arith.constant 0 : index
    %c0_11 = arith.constant 0 : index
    %18 = vector.load %arg6[%c0_9, %c0_10, %c0_11] : memref<1x1x256xi32, #tpu.memory_space<vmem>>, vector<1x1x256xi32>
    %19 = vector.shape_cast %18 : vector<1x1x256xi32> to vector<1x256xi32>
    %20 = vector.shape_cast %17 : vector<1x256xi32> to vector<1x1x256xi32>
    tpu.vector_store %arg6[%c0_9, %c0_10, %c0_11], %20 {strides = array<i32>} : memref<1x1x256xi32, #tpu.memory_space<vmem>>, vector<1x1x256xi32>,
    %21 = vector.broadcast %17 : vector<1x256xi32> to vector<64x256xi32>
    %22 = arith.cmpi eq, %9, %21 : vector<64x256xi32>
    %23 = arith.extui %22 : vector<64x256xi1> to vector<64x256xi32>
    %24 = arith.sitofp %23 : vector<64x256xi32> to vector<64x256xf32>
    %cst_12 = arith.constant dense<0.000000e+00> : vector<8x256xf32>
    %25 = tpu.matmul %2, %24, %cst_12 {dimension_numbers = #tpu.dot_dimension_numbers<[0], [0], [1], [1], [0, 1, 1, 1], [], []>} : vector<64x8xf32>, vector<64x256xf32>, vector<8x256xf32> -> vector<8x256xf32>
    %c0_13 = arith.constant 0 : index
    %c0_14 = arith.constant 0 : index
    %c0_15 = arith.constant 0 : index
    %26 = vector.load %arg5[%c0_13, %c0_14, %c0_15] : memref<1x8x256xf32, #tpu.memory_space<vmem>>, vector<1x8x256xf32>
    %27 = vector.shape_cast %26 : vector<1x8x256xf32> to vector<8x256xf32>
    %28 = vector.shape_cast %25 : vector<8x256xf32> to vector<1x8x256xf32>
    tpu.vector_store %arg5[%c0_13, %c0_14, %c0_15], %28 {strides = array<i32>} : memref<1x8x256xf32, #tpu.memory_space<vmem>>, vector<1x8x256xf32>,
    %29 = arith.subf %25, %1 : vector<8x256xf32>
    %30 = arith.mulf %29, %29 : vector<8x256xf32>
    %31 = vector.shape_cast %30 : vector<8x256xf32> to vector<1x8x256xf32>
    %cst_16 = arith.constant dense<0.000000e+00> : vector<1xf32>
    %32 = vector.multi_reduction <add>, %31, %cst_16 [1, 2] : vector<1x8x256xf32> to vector<1xf32>
    %33 = vector.shape_cast %32 : vector<1xf32> to vector<1x1x1xf32>
    %34 = vector.extract %33[0, 0, 0] : f32 from vector<1x1x1xf32>
    %c0_i32 = arith.constant 0 : i32
    %35 = arith.cmpi eq, %arg1, %c0_i32 : i32
    %36 = arith.extui %35 : i1 to i32
    %c0_i32_17 = arith.constant 0 : i32
    %37 = arith.cmpi ne, %36, %c0_i32_17 : i32
    scf.if %37 {
      %cst_24 = arith.constant 0.000000e+00 : f32
      %45 = vector.broadcast %cst_24 : f32 to vector<1x1xf32>
      %c0_25 = arith.constant 0 : index
      %c0_26 = arith.constant 0 : index
      %c0_27 = arith.constant 0 : index
      %46 = vector.load %arg7[%c0_25, %c0_26, %c0_27] : memref<1x1x1xf32, #tpu.memory_space<vmem>>, vector<1x1x1xf32>
      %47 = vector.shape_cast %46 : vector<1x1x1xf32> to vector<1x1xf32>
      %48 = vector.shape_cast %45 : vector<1x1xf32> to vector<1x1x1xf32>
      tpu.vector_store %arg7[%c0_25, %c0_26, %c0_27], %48 {strides = array<i32>} : memref<1x1x1xf32, #tpu.memory_space<vmem>>, vector<1x1x1xf32>,
    } else {
    }
    %c0_18 = arith.constant 0 : index
    %c0_19 = arith.constant 0 : index
    %c0_20 = arith.constant 0 : index
    %38 = vector.load %arg7[%c0_18, %c0_19, %c0_20] : memref<1x1x1xf32, #tpu.memory_space<vmem>>, vector<1x1x1xf32>
    %39 = vector.shape_cast %38 : vector<1x1x1xf32> to vector<1x1xf32>
    %40 = vector.broadcast %34 : f32 to vector<1x1xf32>
    %41 = arith.addf %39, %40 : vector<1x1xf32>
    %c0_21 = arith.constant 0 : index
    %c0_22 = arith.constant 0 : index
    %c0_23 = arith.constant 0 : index
    %42 = vector.load %arg7[%c0_21, %c0_22, %c0_23] : memref<1x1x1xf32, #tpu.memory_space<vmem>>, vector<1x1x1xf32>
    %43 = vector.shape_cast %42 : vector<1x1x1xf32> to vector<1x1xf32>
    %44 = vector.shape_cast %41 : vector<1x1xf32> to vector<1x1x1xf32>
    tpu.vector_store %arg7[%c0_21, %c0_22, %c0_23], %44 {strides = array<i32>} : memref<1x1x1xf32, #tpu.memory_space<vmem>>, vector<1x1x1xf32>,
    return
  }
  func.func @transform_0(%arg0: i32, %arg1: i32) -> (i32, i32, i32) {
    %c0_i32 = arith.constant 0 : i32
    %c0_i32_0 = arith.constant 0 : i32
    return %arg0, %c0_i32, %arg1 : i32, i32, i32
  }
  func.func @transform_1(%arg0: i32, %arg1: i32) -> (i32, i32) {
    %c0_i32 = arith.constant 0 : i32
    %c0_i32_0 = arith.constant 0 : i32
    %c0_i32_1 = arith.constant 0 : i32
    return %c0_i32, %c0_i32_0 : i32, i32
  }
  func.func @transform_2(%arg0: i32, %arg1: i32) -> (i32, i32) {
    %c0_i32 = arith.constant 0 : i32
    %c0_i32_0 = arith.constant 0 : i32
    %c0_i32_1 = arith.constant 0 : i32
    return %c0_i32, %c0_i32_0 : i32, i32
  }
  func.func @transform_3(%arg0: i32, %arg1: i32) -> (i32, i32, i32) {
    %c0_i32 = arith.constant 0 : i32
    %c0_i32_0 = arith.constant 0 : i32
    return %arg0, %c0_i32, %arg1 : i32, i32, i32
  }
  func.func @transform_4(%arg0: i32, %arg1: i32) -> (i32, i32, i32) {
    %c0_i32 = arith.constant 0 : i32
    %c0_i32_0 = arith.constant 0 : i32
    return %arg0, %c0_i32, %arg1 : i32, i32, i32
  }
  func.func @transform_5(%arg0: i32, %arg1: i32) -> (i32, i32, i32) {
    %c0_i32 = arith.constant 0 : i32
    %c0_i32_0 = arith.constant 0 : i32
    %c0_i32_1 = arith.constant 0 : i32
    return %arg0, %c0_i32, %c0_i32_0 : i32, i32, i32
  }
}

</mosaic_0001>

<llo_original>
// kernel: tpu_custom_call.1
$region0: #{tpu_custom_call.1}
  #allocation0 [shape = 'u32[]', space=smem, size = 0x4, offset = 0x4, fixed_abs, tag = 'smem constant byte address 0x4 - core index']
  #allocation1 [shape = 'u32[144,128]{1,0:T(1,128)}', space=vmem, size = 0x12000, scoped, tag = 'internal scratch']
  %s0 = inlined_call_operand.vmem [shape: f32[2,8,256], index: 0, kind: input, shape index: {}]
  %s1 = inlined_call_operand.vmem [shape: f32[64,8], index: 1, kind: input, shape index: {}]
  %s2 = inlined_call_operand.vmem [shape: f32[64,1], index: 2, kind: input, shape index: {}]
  %s3 = inlined_call_operand.hbm [shape: f32[2,8,256], index: 3, kind: output, shape index: {0}]
  %s4 = inlined_call_operand.hbm [shape: s32[2,1,256], index: 4, kind: output, shape index: {1}]
  %s5 = inlined_call_operand.vmem [shape: f32[2,1,1], index: 5, kind: output, shape index: {2}]
  %6 = xla_tuple %s3, %s4, %s5
  %s7 = sld [smem:[#allocation0]]
  $region65: #{tpu_custom_call.1} parent=0
    _
  %s9 = ssub.s32 1, %s7
  %s10 = scalar_select 0, %s9, %s7
  $region1: #{tpu_custom_call.1} parent=0
    #allocation2 [shape = 'u8[16384]{0}', space=vmem, size = 0x4000, scoped, tag = 'output window, operand 0']
    #allocation3 [shape = 's32[2]{0}', space=sflag, size = 0x8, scoped, tag = 'scoped memory for tpu_custom_call.1']
    #allocation4 [shape = 'u8[2048]{0}', space=vmem, size = 0x800, scoped, tag = 'output window, operand 1']
    #allocation5 [shape = 's32[2]{0}', space=sflag, size = 0x8, scoped, tag = 'scoped memory for tpu_custom_call.1']
    %11 = vsyncpa [#allocation3], 0
    %s12 = scalar_lea.sflag [#allocation3], 1
    %13 = vsyncpa %s12, 0
    %14 = vsyncpa [#allocation5], 0
    %s15 = scalar_lea.sflag [#allocation5], 1
    %16 = vsyncpa %s15, 0
    loop: start=0, step=1, limit=4
    $region2: #{tpu_custom_call.1} parent=1 // loop_pre_header
      _
    $region3: #{tpu_custom_call.1} parent=1 // loop_header
      %s18 = sphi 0, %s22
      %p19 = scmp.ge.s32.totalorder %s18, 4
      %s25 = sphi 0, %s37
      %s26 = sphi 0, %s33
      %s27 = sphi 0, %s25
      %s28 = sphi 0, %s26
      %s29 = sphi 0, %s27
      %s30 = sphi 0, %s28
      %s42 = sphi 0, %s44
      %s45 = sphi 0, %s42
      %s46 = sphi 0, %s45
      %s62 = sphi 0, %s46
      %s66 = sphi 0, %s66
      %s68 = sphi 0, %s66
      %s69 = sphi 0, %s68
      %s83 = sphi 0, %s69
      %s87 = sphi 0, %s87
      %s89 = sphi 0, %s87
      %s90 = sphi 0, %s89
      %s104 = sphi 0, %s90
      %s112 = sphi 0, %s114
      %s115 = sphi 0, %s112
      %s116 = sphi 0, %s115
      %s132 = sphi 0, %s116
      %s140 = sphi 0, %s142
      %s143 = sphi 0, %s140
      %s144 = sphi 0, %s143
      %s160 = sphi 0, %s144
      %s166 = sphi 0, %s168
      %s169 = sphi 0, %s166
      %s170 = sphi 0, %s169
      %s186 = sphi 0, %s170
    $region4: #{tpu_custom_call.1} parent=1 // loop_header_branch
      %21 = sbr.rel (%p19) target = $region8
    $region5: #{tpu_custom_call.1} parent=1 // loop_body
      %s23 = ssub.s32 %s18, 1
      %s24 = ssub.s32 %s18, 2
      %s31 = sadd.s32 1, %s26
      %p32 = scmp.ge.s32.totalorder %s31, 1
      %s33 = scalar_select %p32, 0, %s31
      %s34 = sadd.s32 1, %s25
      %s35 = scalar_select %p32, %s34, %s25
      %p36 = scmp.ge.s32.totalorder %s35, 2
      %s37 = scalar_select %p36, 0, %s35
      %s38 = ssub.s32 %s25, %s37
      %s39 = ssub.s32 %s26, %s33
      %s40 = sor.u32 %s38, %s39
      %p41 = scmp.eq.s32.totalorder %s40, 0
      %s43 = sadd.s32 %s42, 1
      %s44 = scalar_select %p41, %s42, %s43
      %p47 = pneg %p41
      %p48 = scmp.eq.s32.totalorder %s18, 1
      %p49 = por %p47, %p48
      %p50 = scmp.ne.s32.totalorder %s42, %s45
      %p51 = scmp.eq.s32.totalorder %s18, 0
      %p52 = por %p50, %p51
      %p53 = scmp.ne.s32.totalorder %s42, %s45
      %p54 = scmp.eq.s32.totalorder %s23, 1
      %p55 = por %p53, %p54
      %p56 = scmp.ne.s32.totalorder %s45, %s46
      %p57 = scmp.eq.s32.totalorder %s23, 0
      %p58 = por %p56, %p57
      %p59 = scmp.ne.s32.totalorder %s45, %s46
      %p60 = scmp.eq.s32.totalorder %s24, 1
      %p61 = por %p59, %p60
      %p63 = scmp.ne.s32.totalorder %s46, %s62
      %p64 = scmp.eq.s32.totalorder %s24, 0
      %p65 = por %p63, %p64
      %s67 = sadd.s32 %s66, 1
      %p70 = scmp.eq.s32.totalorder %s18, 1
      %p71 = scmp.ne.s32.totalorder %s66, %s68
      %p72 = scmp.eq.s32.totalorder %s18, 0
      %p73 = por %p71, %p72
      %p74 = scmp.ne.s32.totalorder %s66, %s68
      %p75 = scmp.eq.s32.totalorder %s23, 1
      %p76 = por %p74, %p75
      %p77 = scmp.ne.s32.totalorder %s68, %s69
      %p78 = scmp.eq.s32.totalorder %s23, 0
      %p79 = por %p77, %p78
      %p80 = scmp.ne.s32.totalorder %s68, %s69
      %p81 = scmp.eq.s32.totalorder %s24, 1
      %p82 = por %p80, %p81
      %p84 = scmp.ne.s32.totalorder %s69, %s83
      %p85 = scmp.eq.s32.totalorder %s24, 0
      %p86 = por %p84, %p85
      %s88 = sadd.s32 %s87, 1
      %p91 = scmp.eq.s32.totalorder %s18, 1
      %p92 = scmp.ne.s32.totalorder %s87, %s89
      %p93 = scmp.eq.s32.totalorder %s18, 0
      %p94 = por %p92, %p93
      %p95 = scmp.ne.s32.totalorder %s87, %s89
      %p96 = scmp.eq.s32.totalorder %s23, 1
      %p97 = por %p95, %p96
      %p98 = scmp.ne.s32.totalorder %s89, %s90
      %p99 = scmp.eq.s32.totalorder %s23, 0
      %p100 = por %p98, %p99
      %p101 = scmp.ne.s32.totalorder %s89, %s90
      %p102 = scmp.eq.s32.totalorder %s24, 1
      %p103 = por %p101, %p102
      %p105 = scmp.ne.s32.totalorder %s90, %s104
      %p106 = scmp.eq.s32.totalorder %s24, 0
      %p107 = por %p105, %p106
      %s108 = ssub.s32 %s25, %s37
      %s109 = ssub.s32 %s26, %s33
      %s110 = sor.u32 %s108, %s109
      %p111 = scmp.eq.s32.totalorder %s110, 0
      %s113 = sadd.s32 %s112, 1
      %s114 = scalar_select %p111, %s112, %s113
      %p117 = pneg %p111
      %p118 = scmp.eq.s32.totalorder %s18, 1
      %p119 = por %p117, %p118
      %p120 = scmp.ne.s32.totalorder %s112, %s115
      %p121 = scmp.eq.s32.totalorder %s18, 0
      %p122 = por %p120, %p121
      %p123 = scmp.ne.s32.totalorder %s112, %s115
      %p124 = scmp.eq.s32.totalorder %s23, 1
      %p125 = por %p123, %p124
      %p126 = scmp.ne.s32.totalorder %s115, %s116
      %p127 = scmp.eq.s32.totalorder %s23, 0
      %p128 = por %p126, %p127
      %p129 = scmp.ne.s32.totalorder %s115, %s116
      %p130 = scmp.eq.s32.totalorder %s24, 1
      %p131 = por %p129, %p130
      %p133 = scmp.ne.s32.totalorder %s116, %s132
      %p134 = scmp.eq.s32.totalorder %s24, 0
      %p135 = por %p133, %p134
      %s136 = ssub.s32 %s25, %s37
      %s137 = ssub.s32 %s26, %s33
      %s138 = sor.u32 %s136, %s137
      %p139 = scmp.eq.s32.totalorder %s138, 0
      %s141 = sadd.s32 %s140, 1
      %s142 = scalar_select %p139, %s140, %s141
      %p145 = pneg %p139
      %p146 = scmp.eq.s32.totalorder %s18, 1
      %p147 = por %p145, %p146
      %p148 = scmp.ne.s32.totalorder %s140, %s143
      %p149 = scmp.eq.s32.totalorder %s18, 0
      %p150 = por %p148, %p149
      %p151 = scmp.ne.s32.totalorder %s140, %s143
      %p152 = scmp.eq.s32.totalorder %s23, 1
      %p153 = por %p151, %p152
      %p154 = scmp.ne.s32.totalorder %s143, %s144
      %p155 = scmp.eq.s32.totalorder %s23, 0
      %p156 = por %p154, %p155
      %p157 = scmp.ne.s32.totalorder %s143, %s144
      %p158 = scmp.eq.s32.totalorder %s24, 1
      %p159 = por %p157, %p158
      %p161 = scmp.ne.s32.totalorder %s144, %s160
      %p162 = scmp.eq.s32.totalorder %s24, 0
      %p163 = por %p161, %p162
      %s164 = ssub.s32 %s25, %s37
      %p165 = scmp.eq.s32.totalorder %s164, 0
      %s167 = sadd.s32 %s166, 1
      %s168 = scalar_select %p165, %s166, %s167
      %p171 = pneg %p165
      %p172 = scmp.eq.s32.totalorder %s18, 1
      %p173 = por %p171, %p172
      %p174 = scmp.ne.s32.totalorder %s166, %s169
      %p175 = scmp.eq.s32.totalorder %s18, 0
      %p176 = por %p174, %p175
      %p177 = scmp.ne.s32.totalorder %s166, %s169
      %p178 = scmp.eq.s32.totalorder %s23, 1
      %p179 = por %p177, %p178
      %p180 = scmp.ne.s32.totalorder %s169, %s170
      %p181 = scmp.eq.s32.totalorder %s23, 0
      %p182 = por %p180, %p181
      %p183 = scmp.ne.s32.totalorder %s169, %s170
      %p184 = scmp.eq.s32.totalorder %s24, 1
      %p185 = por %p183, %p184
      %p187 = scmp.ne.s32.totalorder %s170, %s186
      %p188 = scmp.eq.s32.totalorder %s24, 0
      %p189 = por %p187, %p188
      %p190 = scmp.le.s32.totalorder 1, %s18
      %p191 = scmp.lt.s32.totalorder %s18, 3
      %p192 = pnand %p190, %p191
      %p193 = pneg %p192
      // Predicated region
      $region9: #{tpu_custom_call.1} parent=5 // pred_check
        _
      $region10: #{tpu_custom_call.1} parent=5 // pred_check_branch
        %195 = sbr.rel (%p192) target = $region12
      $region11: #{tpu_custom_call.1} parent=5 // pred_region
        %s196 = ssub.s32 %s18, 1
        // Predicated region
        $region13: #{tpu_custom_call.1} parent=11 // pred_check
          %p197 = pneg %p79
        $region14: #{tpu_custom_call.1} parent=11 // pred_check_branch
          %199 = sbr.rel (%p197) target = $region16
        $region15: #{tpu_custom_call.1} parent=11 // pred_region
          _
        $region16: #{tpu_custom_call.1} parent=11 // pred_fallthru
          _
        // Predicated region
        $region17: #{tpu_custom_call.1} parent=11 // pred_check
          %p200 = pneg %p100
        $region18: #{tpu_custom_call.1} parent=11 // pred_check_branch
          %202 = sbr.rel (%p200) target = $region20
        $region19: #{tpu_custom_call.1} parent=11 // pred_region
          _
        $region20: #{tpu_custom_call.1} parent=11 // pred_fallthru
          _
      $region12: #{tpu_custom_call.1} parent=5 // pred_fallthru
        _
      %p203 = scmp.lt.s32.totalorder %s18, 2
      // Predicated region
      $region21: #{tpu_custom_call.1} parent=5 // pred_check
        %p204 = pneg %p203
      $region22: #{tpu_custom_call.1} parent=5 // pred_check_branch
        %206 = sbr.rel (%p204) target = $region24
      $region23: #{tpu_custom_call.1} parent=5 // pred_region
        // Predicated region
        $region25: #{tpu_custom_call.1} parent=23 // pred_check
          %p207 = pneg %p52
        $region26: #{tpu_custom_call.1} parent=23 // pred_check_branch
          %209 = sbr.rel (%p207) target = $region28
        $region27: #{tpu_custom_call.1} parent=23 // pred_region
          %s210 = smul.u32 2, %s26
          %p211 = scmp.lt.s32.totalorder %s25, 1
          %s212 = scalar_select %p211, %s25, 1
          %p213 = scmp.lt.s32.totalorder %s210, 1
          %s214 = scalar_select %p213, %s210, 1
          %s215 = smul.addr %s212, 2
          %s216 = sadd.s32 %s214, %s215
          %s217 = smul.addr %s216, 8
          %s218 = scalar_lea.vmem %s0, %s217
          %s219 = smul.u32 2, %s26
        $region28: #{tpu_custom_call.1} parent=23 // pred_fallthru
          _
      $region24: #{tpu_custom_call.1} parent=5 // pred_fallthru
        _
      %p220 = scmp.le.s32.totalorder 1, %s18
      %p221 = scmp.lt.s32.totalorder %s18, 3
      %p222 = pnand %p220, %p221
      %p223 = pneg %p222
      // Predicated region
      $region29: #{tpu_custom_call.1} parent=5 // pred_check
        _
      $region30: #{tpu_custom_call.1} parent=5 // pred_check_branch
        %225 = sbr.rel (%p222) target = $region32
      $region31: #{tpu_custom_call.1} parent=5 // pred_region
        %s226 = ssub.s32 %s18, 1
        %s227 = smul.u32 2, %s28
        %p228 = scmp.lt.s32.totalorder %s27, 1
        %s229 = scalar_select %p228, %s27, 1
        %p230 = scmp.lt.s32.totalorder %s227, 1
        %s231 = scalar_select %p230, %s227, 1
        %s232 = smul.addr %s229, 2
        %s233 = sadd.s32 %s231, %s232
        %s234 = smul.addr %s233, 8
        %s235 = scalar_lea.vmem %s0, %s234
        %p236 = pneg %p58
        %p237 = pneg %p55
        %p238 = pneg %p79
        %p239 = pneg %p76
        %p240 = pneg %p100
        %p241 = pneg %p97
        %p242 = pneg %p128
        %p243 = pneg %p125
        %s244 = sand.u32 %s115, 1
        %s245 = scalar_lea.sflag [#allocation3], %s244
        %s246 = sand.u32 %s115, 1
        %s247 = smul.addr %s246, 16
        %s248 = scalar_lea.vmem [#allocation2], %s247
        %p249 = pneg %p156
        %p250 = pneg %p153
        %s251 = sand.u32 %s143, 1
        %s252 = scalar_lea.sflag [#allocation5], %s251
        %s253 = sand.u32 %s143, 1
        %s254 = smul.addr %s253, 2
        %s255 = scalar_lea.vmem [#allocation4], %s254
        %p256 = pneg %p182
        %p257 = pneg %p179
        %p258 = scmp.lt.s32.totalorder %s27, 1
        %s259 = scalar_select %p258, %s27, 1
        %s260 = scalar_lea.vmem %s5, %s259
        %s261 = smul.u32 2, %s28
        %p262 = scmp.lt.s32.totalorder %s27, 1
        %s263 = scalar_select %p262, %s27, 1
        %p264 = scmp.lt.s32.totalorder %s261, 1
        %s265 = scalar_select %p264, %s261, 1
        %s266 = smul.addr %s263, 2
        %s267 = sadd.s32 %s265, %s266
        %s268 = smul.addr %s267, 8
        %s269 = scalar_lea.vmem %s0, %s268
        %s270 = smul.u32 2, %s28
        %s271 = smul.u32 2, %s28
        %s272 = smul.u32 2, %s28
        %p273 = scmp.lt.s32.totalorder %s27, 1
        %s274 = scalar_select %p273, %s27, 1
        %s275 = scalar_lea.vmem %s5, %s274
        %v276 = vld [vmem:[%s269] sm:$0xff]
        %v277 = vld [vmem:[%s269 + $0x8] sm:$0xff]
        %v278 = vld [vmem:[%s1] sm:$0xff]
        %v279 = vld [vmem:[%s1 + $0x8] sm:$0xff]
        %v280 = vld [vmem:[%s1 + $0x10] sm:$0xff]
        %v281 = vld [vmem:[%s1 + $0x18] sm:$0xff]
        %v282 = vld [vmem:[%s1 + $0x20] sm:$0xff]
        %v283 = vld [vmem:[%s1 + $0x28] sm:$0xff]
        %v284 = vld [vmem:[%s1 + $0x30] sm:$0xff]
        %v285 = vld [vmem:[%s1 + $0x38] sm:$0xff]
        %vm286 = vcmask 64512
        %v288 = vsel %vm286, %v278, 0
        %v291 = vsel %vm286, %v279, 0
        %v294 = vsel %vm286, %v280, 0
        %v297 = vsel %vm286, %v281, 0
        %v300 = vsel %vm286, %v282, 0
        %v303 = vsel %vm286, %v283, 0
        %v306 = vsel %vm286, %v284, 0
        %v309 = vsel %vm286, %v285, 0
        %311 = vmatprep.subr.mxu0 %v277
        %312 = vmatpush1.msra.mxu0 %v276
        %313 = vmatprep.subr.mxu0 0.0
        %314 = vmatpush1.msra.mxu0 0.0
        %315 = vmatprep.subr.mxu0 0.0
        %316 = vmatpush1.msra.mxu0 0.0
        %317 = vmatprep.subr.mxu0 0.0
        %318 = vmatpush1.msra.mxu0 0.0
        %319 = vmatprep.subr.mxu0 0.0
        %320 = vmatpush1.msra.mxu0 0.0
        %321 = vmatprep.subr.mxu0 0.0
        %322 = vmatpush1.msra.mxu0 0.0
        %323 = vmatprep.subr.mxu0 0.0
        %324 = vmatpush1.msra.mxu0 0.0
        %325 = vmatprep.subr.mxu0 0.0
        %326 = vmatpush1.msra.mxu0 0.0
        %327 = vmatprep.subr.mxu0 0.0
        %328 = vmatpush1.msra.mxu0 0.0
        %329 = vmatprep.subr.mxu0 0.0
        %330 = vmatpush1.msra.mxu0 0.0
        %331 = vmatprep.subr.mxu0 0.0
        %332 = vmatpush1.msra.mxu0 0.0
        %333 = vmatprep.subr.mxu0 0.0
        %334 = vmatpush1.msra.mxu0 0.0
        %335 = vmatprep.subr.mxu0 0.0
        %336 = vmatpush1.msra.mxu0 0.0
        %337 = vmatprep.subr.mxu0 0.0
        %338 = vmatpush1.msra.mxu0 0.0
        %339 = vmatprep.subr.mxu0 0.0
        %340 = vmatpush1.msra.mxu0 0.0
        %341 = vmatprep.subr.mxu0 0.0
        %342 = vmatpush1.msra.mxu0 0.0
        %343 = vmatprep.subr.mxu0 0.0
        %344 = vmatpush1.msra.mxu0 0.0
        %345 = vmatprep.subr.mxu0 0.0
        %346 = vmatpush1.msra.mxu0 0.0
        %347 = vmatprep.subr.mxu0 0.0
        %348 = vmatpush1.msra.mxu0 0.0
        %349 = vmatprep.subr.mxu0 0.0
        %350 = vmatpush1.msra.mxu0 0.0
        %351 = vmatprep.subr.mxu0 0.0
        %352 = vmatpush1.msra.mxu0 0.0
        %353 = vmatprep.subr.mxu0 0.0
        %354 = vmatpush1.msra.mxu0 0.0
        %355 = vmatprep.subr.mxu0 0.0
        %356 = vmatpush1.msra.mxu0 0.0
        %357 = vmatprep.subr.mxu0 0.0
        %358 = vmatpush1.msra.mxu0 0.0
        %359 = vmatprep.subr.mxu0 0.0
        %360 = vmatpush1.msra.mxu0 0.0
        %361 = vmatprep.subr.mxu0 0.0
        %362 = vmatpush1.msra.mxu0 0.0
        %363 = vmatprep.subr.mxu0 0.0
        %364 = vmatpush1.msra.mxu0 0.0
        %365 = vmatprep.subr.mxu0 0.0
        %366 = vmatpush1.msra.mxu0 0.0
        %367 = vmatprep.subr.mxu0 0.0
        %368 = vmatpush1.msra.mxu0 0.0
        %369 = vmatprep.subr.mxu0 0.0
        %370 = vmatpush1.msra.mxu0 0.0
        %371 = vmatprep.subr.mxu0 0.0
        %372 = vmatpush1.msra.mxu0 0.0
        %373 = vmatprep.subr.mxu0 0.0
        %374 = vmatpush1.msra.mxu0 0.0
        %375 = vmatprep.mubr.f32.mxu0 0.0
        %376 = vmatmul.mubr.f32.gmra.mrb[0].mxu0 %v288
        %v377 = vpop.f32.mrb[0].mxu0
        %v378 = vadd.f32 0.0, %v377
        %v379 = vpop.f32.mrb[0].mxu0
        %v380 = vadd.f32 0.0, %v379
        %381 = vmatprep.mubr.f32.mxu0 0.0
        %382 = vmatmul.mubr.f32.gmra.mrb[0].mxu0 %v291
        %v383 = vpop.f32.mrb[0].mxu0
        %v384 = vadd.f32 0.0, %v383
        %v385 = vpop.f32.mrb[0].mxu0
        %v386 = vadd.f32 0.0, %v385
        %387 = vmatprep.mubr.f32.mxu0 0.0
        %388 = vmatmul.mubr.f32.gmra.mrb[0].mxu0 %v294
        %v389 = vpop.f32.mrb[0].mxu0
        %v390 = vadd.f32 0.0, %v389
        %v391 = vpop.f32.mrb[0].mxu0
        %v392 = vadd.f32 0.0, %v391
        %393 = vmatprep.mubr.f32.mxu0 0.0
        %394 = vmatmul.mubr.f32.gmra.mrb[0].mxu0 %v297
        %v395 = vpop.f32.mrb[0].mxu0
        %v396 = vadd.f32 0.0, %v395
        %v397 = vpop.f32.mrb[0].mxu0
        %v398 = vadd.f32 0.0, %v397
        %399 = vmatprep.mubr.f32.mxu0 0.0
        %400 = vmatmul.mubr.f32.gmra.mrb[0].mxu0 %v300
        %v401 = vpop.f32.mrb[0].mxu0
        %v402 = vadd.f32 0.0, %v401
        %v403 = vpop.f32.mrb[0].mxu0
        %v404 = vadd.f32 0.0, %v403
        %405 = vmatprep.mubr.f32.mxu0 0.0
        %406 = vmatmul.mubr.f32.gmra.mrb[0].mxu0 %v303
        %v407 = vpop.f32.mrb[0].mxu0
        %v408 = vadd.f32 0.0, %v407
        %v409 = vpop.f32.mrb[0].mxu0
        %v410 = vadd.f32 0.0, %v409
        %411 = vmatprep.mubr.f32.mxu0 0.0
        %412 = vmatmul.mubr.f32.gmra.mrb[0].mxu0 %v306
        %v413 = vpop.f32.mrb[0].mxu0
        %v414 = vadd.f32 0.0, %v413
        %v415 = vpop.f32.mrb[0].mxu0
        %v416 = vadd.f32 0.0, %v415
        %417 = vmatprep.mubr.f32.mxu0 0.0
        %418 = vmatmul.mubr.f32.gmra.mrb[0].mxu0 %v309
        %v419 = vpop.f32.mrb[0].mxu0
        %v420 = vadd.f32 0.0, %v419
        %v421 = vpop.f32.mrb[0].mxu0
        %v422 = vadd.f32 0.0, %v421
        %423 = vdwg.mxu0
        %v424 = vld [vmem:[%s2] sm:$0xff]
        %v425 = vld [vmem:[%s2 + $0x8] sm:$0xff]
        %v426 = vld [vmem:[%s2 + $0x10] sm:$0xff]
        %v427 = vld [vmem:[%s2 + $0x18] sm:$0xff]
        %v428 = vld [vmem:[%s2 + $0x20] sm:$0xff]
        %v429 = vld [vmem:[%s2 + $0x28] sm:$0xff]
        %v430 = vld [vmem:[%s2 + $0x30] sm:$0xff]
        %v431 = vld [vmem:[%s2 + $0x38] sm:$0xff]
        %v432 = vmul.f32 %v378, 2.0
        %v433 = vmul.f32 %v380, 2.0
        %v434 = vmul.f32 %v384, 2.0
        %v435 = vmul.f32 %v386, 2.0
        %v436 = vmul.f32 %v390, 2.0
        %v437 = vmul.f32 %v392, 2.0
        %v438 = vmul.f32 %v396, 2.0
        %v439 = vmul.f32 %v398, 2.0
        %v440 = vmul.f32 %v402, 2.0
        %v441 = vmul.f32 %v404, 2.0
        %v442 = vmul.f32 %v408, 2.0
        %v443 = vmul.f32 %v410, 2.0
        %v444 = vmul.f32 %v414, 2.0
        %v445 = vmul.f32 %v416, 2.0
        %v446 = vmul.f32 %v420, 2.0
        %v447 = vmul.f32 %v422, 2.0
        %449 = vset.pattern.permute.xlu0 0
        %450 = vperm.xlu0 %449, %v424
        %v451 = vpop.permute.xlu0 %450
        %454 = vset.pattern.permute.xlu0 0
        %455 = vperm.xlu0 %454, %v425
        %v456 = vpop.permute.xlu0 %455
        %459 = vset.pattern.permute.xlu0 0
        %460 = vperm.xlu0 %459, %v426
        %v461 = vpop.permute.xlu0 %460
        %464 = vset.pattern.permute.xlu0 0
        %465 = vperm.xlu0 %464, %v427
        %v466 = vpop.permute.xlu0 %465
        %469 = vset.pattern.permute.xlu0 0
        %470 = vperm.xlu0 %469, %v428
        %v471 = vpop.permute.xlu0 %470
        %474 = vset.pattern.permute.xlu0 0
        %475 = vperm.xlu0 %474, %v429
        %v476 = vpop.permute.xlu0 %475
        %479 = vset.pattern.permute.xlu0 0
        %480 = vperm.xlu0 %479, %v430
        %v481 = vpop.permute.xlu0 %480
        %484 = vset.pattern.permute.xlu0 0
        %485 = vperm.xlu0 %484, %v431
        %v486 = vpop.permute.xlu0 %485
        %v488 = vsub.f32 %v451, %v432
        %v489 = vsub.f32 %v451, %v433
        %v490 = vsub.f32 %v456, %v434
        %v491 = vsub.f32 %v456, %v435
        %v492 = vsub.f32 %v461, %v436
        %v493 = vsub.f32 %v461, %v437
        %v494 = vsub.f32 %v466, %v438
        %v495 = vsub.f32 %v466, %v439
        %v496 = vsub.f32 %v471, %v440
        %v497 = vsub.f32 %v471, %v441
        %v498 = vsub.f32 %v476, %v442
        %v499 = vsub.f32 %v476, %v443
        %v500 = vsub.f32 %v481, %v444
        %v501 = vsub.f32 %v481, %v445
        %v502 = vsub.f32 %v486, %v446
        %v503 = vsub.f32 %v486, %v447
        %v504 = vlaneseq
        %v505 = vshrl.u32 %v504, 7
        %v506 = vadd.s32 %v505, 8
        %v507 = vadd.s32 %v505, 16
        %v508 = vadd.s32 %v505, 24
        %v509 = vadd.s32 %v505, 32
        %v510 = vadd.s32 %v505, 40
        %v511 = vadd.s32 %v505, 48
        %v512 = vadd.s32 %v505, 56
        %v513 = vmin.f32 %v488, %v492
        %v514 = vmin.f32 %v490, %v494
        %v515 = vmin.f32 %v513, %v496
        %v516 = vmin.f32 %v514, %v498
        %v517 = vmin.f32 %v515, %v500
        %v518 = vmin.f32 %v516, %v502
        %v519 = vmin.f32 %v517, %v518
        %v520 = vrot.slane %v519, 4
        %v521 = vmin.f32 %v519, %v520
        %v522 = vrot.slane %v521, 2
        %v523 = vmin.f32 %v521, %v522
        %v524 = vrot.slane %v523, 1
        %v525 = vmin.f32 %v523, %v524
        %v526 = vmin.f32 %v489, %v493
        %v527 = vmin.f32 %v491, %v495
        %v528 = vmin.f32 %v526, %v497
        %v529 = vmin.f32 %v527, %v499
        %v530 = vmin.f32 %v528, %v501
        %v531 = vmin.f32 %v529, %v503
        %v532 = vmin.f32 %v530, %v531
        %v533 = vrot.slane %v532, 4
        %v534 = vmin.f32 %v532, %v533
        %v535 = vrot.slane %v534, 2
        %v536 = vmin.f32 %v534, %v535
        %v537 = vrot.slane %v536, 1
        %v538 = vmin.f32 %v536, %v537
        %vm539 = vcmp.eq.f32.partialorder %v488, %v525
        %vm540 = vcmp.eq.f32.partialorder %v489, %v538
        %vm541 = vcmp.eq.f32.partialorder %v490, %v525
        %vm542 = vcmp.eq.f32.partialorder %v491, %v538
        %vm543 = vcmp.eq.f32.partialorder %v492, %v525
        %vm544 = vcmp.eq.f32.partialorder %v493, %v538
        %vm545 = vcmp.eq.f32.partialorder %v494, %v525
        %vm546 = vcmp.eq.f32.partialorder %v495, %v538
        %vm547 = vcmp.eq.f32.partialorder %v496, %v525
        %vm548 = vcmp.eq.f32.partialorder %v497, %v538
        %vm549 = vcmp.eq.f32.partialorder %v498, %v525
        %vm550 = vcmp.eq.f32.partialorder %v499, %v538
        %vm551 = vcmp.eq.f32.partialorder %v500, %v525
        %vm552 = vcmp.eq.f32.partialorder %v501, %v538
        %vm553 = vcmp.eq.f32.partialorder %v502, %v525
        %vm554 = vcmp.eq.f32.partialorder %v503, %v538
        %v555 = vsel %vm539, %v505, 64
        %v556 = vsel %vm540, %v505, 64
        %v557 = vsel %vm541, %v506, 64
        %v558 = vsel %vm542, %v506, 64
        %v559 = vsel %vm543, %v507, 64
        %v560 = vsel %vm544, %v507, 64
        %v561 = vsel %vm545, %v508, 64
        %v562 = vsel %vm546, %v508, 64
        %v563 = vsel %vm547, %v509, 64
        %v564 = vsel %vm548, %v509, 64
        %v565 = vsel %vm549, %v510, 64
        %v566 = vsel %vm550, %v510, 64
        %v567 = vsel %vm551, %v511, 64
        %v568 = vsel %vm552, %v511, 64
        %v569 = vsel %vm553, %v512, 64
        %v570 = vsel %vm554, %v512, 64
        %vm571 = vcmp.lt.s32.totalorder %v555, %v559
        %v572 = vsel %vm571, %v555, %v559
        %vm573 = vcmp.lt.s32.totalorder %v557, %v561
        %v574 = vsel %vm573, %v557, %v561
        %vm575 = vcmp.lt.s32.totalorder %v572, %v563
        %v576 = vsel %vm575, %v572, %v563
        %vm577 = vcmp.lt.s32.totalorder %v574, %v565
        %v578 = vsel %vm577, %v574, %v565
        %vm579 = vcmp.lt.s32.totalorder %v576, %v567
        %v580 = vsel %vm579, %v576, %v567
        %vm581 = vcmp.lt.s32.totalorder %v578, %v569
        %v582 = vsel %vm581, %v578, %v569
        %vm583 = vcmp.lt.s32.totalorder %v580, %v582
        %v584 = vsel %vm583, %v580, %v582
        %v585 = vrot.slane %v584, 4
        %vm586 = vcmp.lt.s32.totalorder %v584, %v585
        %v587 = vsel %vm586, %v584, %v585
        %v588 = vrot.slane %v587, 2
        %vm589 = vcmp.lt.s32.totalorder %v587, %v588
        %v590 = vsel %vm589, %v587, %v588
        %v591 = vrot.slane %v590, 1
        %vm592 = vcmp.lt.s32.totalorder %v590, %v591
        %v593 = vsel %vm592, %v590, %v591
        %vm594 = vcmp.lt.s32.totalorder %v556, %v560
        %v595 = vsel %vm594, %v556, %v560
        %vm596 = vcmp.lt.s32.totalorder %v558, %v562
        %v597 = vsel %vm596, %v558, %v562
        %vm598 = vcmp.lt.s32.totalorder %v595, %v564
        %v599 = vsel %vm598, %v595, %v564
        %vm600 = vcmp.lt.s32.totalorder %v597, %v566
        %v601 = vsel %vm600, %v597, %v566
        %vm602 = vcmp.lt.s32.totalorder %v599, %v568
        %v603 = vsel %vm602, %v599, %v568
        %vm604 = vcmp.lt.s32.totalorder %v601, %v570
        %v605 = vsel %vm604, %v601, %v570
        %vm606 = vcmp.lt.s32.totalorder %v603, %v605
        %v607 = vsel %vm606, %v603, %v605
        %v608 = vrot.slane %v607, 4
        %vm609 = vcmp.lt.s32.totalorder %v607, %v608
        %v610 = vsel %vm609, %v607, %v608
        %v611 = vrot.slane %v610, 2
        %vm612 = vcmp.lt.s32.totalorder %v610, %v611
        %v613 = vsel %vm612, %v610, %v611
        %v614 = vrot.slane %v613, 1
        %vm615 = vcmp.lt.s32.totalorder %v613, %v614
        %v616 = vsel %vm615, %v613, %v614
        %v617 = vcombine.low %v593, %v616
        %v619 = vunpack.c.l.s4 1966171168
        %v620 = vunpack.c.0.s8 %v619
        %v621 = vlaneseq
        %v622 = vshrl.u32 %v621, 7
        %v623 = vsub.s32 %v620, %v622
        %v624 = vrot.slane %v617, %v623
        %v626 = vunpack.c.l.s4 1966171168
        %v627 = vunpack.c.0.s8 %v626
        %v628 = vlaneseq
        %v629 = vshrl.u32 %v628, 7
        %v630 = vsub.s32 %v627, %v629
        %v631 = vrot.slane %v624, %v630
        %v632 = vlaneseq
        %vm633 = vcmp.ge.s32.totalorder %v632, 0
        %vm634 = vcmp.lt.s32.totalorder %v632, 256
        %vm635 = vmand %vm633, %vm634
        %636 = vst.msk [vmem:[%s255] sm:$0x3] %vm635, %v631
        %vm637 = vcmp.eq.s32.totalorder %v505, %v593
        %vm638 = vcmp.eq.s32.totalorder %v505, %v616
        %vm639 = vcmp.eq.s32.totalorder %v506, %v593
        %vm640 = vcmp.eq.s32.totalorder %v506, %v616
        %vm641 = vcmp.eq.s32.totalorder %v507, %v593
        %vm642 = vcmp.eq.s32.totalorder %v507, %v616
        %vm643 = vcmp.eq.s32.totalorder %v508, %v593
        %vm644 = vcmp.eq.s32.totalorder %v508, %v616
        %vm645 = vcmp.eq.s32.totalorder %v509, %v593
        %vm646 = vcmp.eq.s32.totalorder %v509, %v616
        %vm647 = vcmp.eq.s32.totalorder %v510, %v593
        %vm648 = vcmp.eq.s32.totalorder %v510, %v616
        %vm649 = vcmp.eq.s32.totalorder %v511, %v593
        %vm650 = vcmp.eq.s32.totalorder %v511, %v616
        %vm651 = vcmp.eq.s32.totalorder %v512, %v593
        %vm652 = vcmp.eq.s32.totalorder %v512, %v616
        %v653 = vsel %vm637, 1, 0
        %v654 = vsel %vm638, 1, 0
        %v655 = vsel %vm639, 1, 0
        %v656 = vsel %vm640, 1, 0
        %v657 = vsel %vm641, 1, 0
        %v658 = vsel %vm642, 1, 0
        %v659 = vsel %vm643, 1, 0
        %v660 = vsel %vm644, 1, 0
        %v661 = vsel %vm645, 1, 0
        %v662 = vsel %vm646, 1, 0
        %v663 = vsel %vm647, 1, 0
        %v664 = vsel %vm648, 1, 0
        %v665 = vsel %vm649, 1, 0
        %v666 = vsel %vm650, 1, 0
        %v667 = vsel %vm651, 1, 0
        %v668 = vsel %vm652, 1, 0
        %v669 = vcvt.s32.f32 %v653
        %v670 = vcvt.s32.f32 %v654
        %v671 = vcvt.s32.f32 %v655
        %v672 = vcvt.s32.f32 %v656
        %v673 = vcvt.s32.f32 %v657
        %v674 = vcvt.s32.f32 %v658
        %v675 = vcvt.s32.f32 %v659
        %v676 = vcvt.s32.f32 %v660
        %v677 = vcvt.s32.f32 %v661
        %v678 = vcvt.s32.f32 %v662
        %v679 = vcvt.s32.f32 %v663
        %v680 = vcvt.s32.f32 %v664
        %v681 = vcvt.s32.f32 %v665
        %v682 = vcvt.s32.f32 %v666
        %v683 = vcvt.s32.f32 %v667
        %v684 = vcvt.s32.f32 %v668
        %685 = vxpose.xlu0.b32.start [1/16] %v278, 128
        %686 = vxpose.xlu0.b32.cont [2/16] %v279, 128
        %687 = vxpose.xlu0.b32.cont [3/16] %v280, 128
        %688 = vxpose.xlu0.b32.cont [4/16] %v281, 128
        %689 = vxpose.xlu0.b32.cont [5/16] %v282, 128
        %690 = vxpose.xlu0.b32.cont [6/16] %v283, 128
        %691 = vxpose.xlu0.b32.cont [7/16] %v284, 128
        %692 = vxpose.xlu0.b32.cont [8/16] %v285, 128
        %693 = vxpose.xlu0.b32.cont [9/16] 0.0, 128
        %694 = vxpose.xlu0.b32.cont [10/16] 0.0, 128
        %695 = vxpose.xlu0.b32.cont [11/16] 0.0, 128
        %696 = vxpose.xlu0.b32.cont [12/16] 0.0, 128
        %697 = vxpose.xlu0.b32.cont [13/16] 0.0, 128
        %698 = vxpose.xlu0.b32.cont [14/16] 0.0, 128
        %699 = vxpose.xlu0.b32.cont [15/16] 0.0, 128
        %700 = vxpose.xlu0.b32.end [16/16] 0.0, 128
        %v701 = vpop.trf.xlu0
        %v702 = vpop.trf.xlu0
        %v703 = vpop.trf.xlu0
        %v704 = vpop.trf.xlu0
        %v705 = vpop.trf.xlu0
        %v706 = vpop.trf.xlu0
        %v707 = vpop.trf.xlu0
        %v708 = vpop.trf.xlu0
        %v709 = vpop.trf.xlu0
        %v710 = vpop.trf.xlu0
        %v711 = vpop.trf.xlu0
        %v712 = vpop.trf.xlu0
        %v713 = vpop.trf.xlu0
        %v714 = vpop.trf.xlu0
        %v715 = vpop.trf.xlu0
        %v716 = vpop.trf.xlu0
        %vm717 = vcmask 523264
        %v719 = vsel %vm717, %v701, 0
        %721 = vmatprep.subr.mxu0 %v670
        %722 = vmatpush1.msra.mxu0 %v669
        %723 = vmatprep.subr.mxu0 %v672
        %724 = vmatpush1.msra.mxu0 %v671
        %725 = vmatprep.subr.mxu0 %v674
        %726 = vmatpush1.msra.mxu0 %v673
        %727 = vmatprep.subr.mxu0 %v676
        %728 = vmatpush1.msra.mxu0 %v675
        %729 = vmatprep.subr.mxu0 %v678
        %730 = vmatpush1.msra.mxu0 %v677
        %731 = vmatprep.subr.mxu0 %v680
        %732 = vmatpush1.msra.mxu0 %v679
        %733 = vmatprep.subr.mxu0 %v682
        %734 = vmatpush1.msra.mxu0 %v681
        %735 = vmatprep.subr.mxu0 %v684
        %736 = vmatpush1.msra.mxu0 %v683
        %737 = vmatprep.subr.mxu0 0.0
        %738 = vmatpush1.msra.mxu0 0.0
        %739 = vmatprep.subr.mxu0 0.0
        %740 = vmatpush1.msra.mxu0 0.0
        %741 = vmatprep.subr.mxu0 0.0
        %742 = vmatpush1.msra.mxu0 0.0
        %743 = vmatprep.subr.mxu0 0.0
        %744 = vmatpush1.msra.mxu0 0.0
        %745 = vmatprep.subr.mxu0 0.0
        %746 = vmatpush1.msra.mxu0 0.0
        %747 = vmatprep.subr.mxu0 0.0
        %748 = vmatpush1.msra.mxu0 0.0
        %749 = vmatprep.subr.mxu0 0.0
        %750 = vmatpush1.msra.mxu0 0.0
        %751 = vmatprep.subr.mxu0 0.0
        %752 = vmatpush1.msra.mxu0 0.0
        %753 = vmatprep.subr.mxu0 0.0
        %754 = vmatpush1.msra.mxu0 0.0
        %755 = vmatprep.subr.mxu0 0.0
        %756 = vmatpush1.msra.mxu0 0.0
        %757 = vmatprep.subr.mxu0 0.0
        %758 = vmatpush1.msra.mxu0 0.0
        %759 = vmatprep.subr.mxu0 0.0
        %760 = vmatpush1.msra.mxu0 0.0
        %761 = vmatprep.subr.mxu0 0.0
        %762 = vmatpush1.msra.mxu0 0.0
        %763 = vmatprep.subr.mxu0 0.0
        %764 = vmatpush1.msra.mxu0 0.0
        %765 = vmatprep.subr.mxu0 0.0
        %766 = vmatpush1.msra.mxu0 0.0
        %767 = vmatprep.subr.mxu0 0.0
        %768 = vmatpush1.msra.mxu0 0.0
        %769 = vmatprep.subr.mxu0 0.0
        %770 = vmatpush1.msra.mxu0 0.0
        %771 = vmatprep.subr.mxu0 0.0
        %772 = vmatpush1.msra.mxu0 0.0
        %773 = vmatprep.subr.mxu0 0.0
        %774 = vmatpush1.msra.mxu0 0.0
        %775 = vmatprep.subr.mxu0 0.0
        %776 = vmatpush1.msra.mxu0 0.0
        %777 = vmatprep.subr.mxu0 0.0
        %778 = vmatpush1.msra.mxu0 0.0
        %779 = vmatprep.subr.mxu0 0.0
        %780 = vmatpush1.msra.mxu0 0.0
        %781 = vmatprep.subr.mxu0 0.0
        %782 = vmatpush1.msra.mxu0 0.0
        %783 = vmatprep.subr.mxu0 0.0
        %784 = vmatpush1.msra.mxu0 0.0
        %785 = vmatprep.mubr.f32.mxu0 0.0
        %786 = vmatmul.mubr.f32.gmra.mrb[0].mxu0 %v719
        %v787 = vpop.f32.mrb[0].mxu0
        %v788 = vadd.f32 0.0, %v787
        %v789 = vpop.f32.mrb[0].mxu0
        %v790 = vadd.f32 0.0, %v789
        %791 = vdwg.mxu0
        %792 = vst [vmem:[%s248] sm:$0xff] %v788
        %793 = vst [vmem:[%s248 + $0x8] sm:$0xff] %v790
        %v794 = vsub.f32 %v788, %v276
        %v795 = vsub.f32 %v790, %v277
        %v796 = vmul.f32 %v794, %v794
        %v797 = vmul.f32 %v795, %v795
        %v798 = vadd.f32 %v796, %v797
        %799 = vadd.xlane.f32.xlu0 %v798
        %v800 = vpop.xlane.xlu0 %799
        %v801 = vrot.slane %v800, 4
        %v802 = vadd.f32 %v800, %v801
        %v803 = vrot.slane %v802, 2
        %v804 = vadd.f32 %v802, %v803
        %v805 = vrot.slane %v804, 1
        %v806 = vadd.f32 %v804, %v805
        %s807 = vtos %v806
        %p808 = scmp.eq.s32.totalorder %s28, 0
        // Predicated region
        $region33: #{tpu_custom_call.1} parent=31 // pred_check
          %p809 = pneg %p808
        $region34: #{tpu_custom_call.1} parent=31 // pred_check_branch
          %811 = sbr.rel (%p809) target = $region36
        $region35: #{tpu_custom_call.1} parent=31 // pred_region
          %vm812 = vcmask 0
          %813 = vst.msk [vmem:[%s275] sm:$0x1] %vm812, 0.0
        $region36: #{tpu_custom_call.1} parent=31 // pred_fallthru
          _
        %v814 = vld [vmem:[%s275] sm:$0x1]
        %v815 = vstv %s807
        %v816 = vadd.f32 %v814, %v815
        %vm817 = vcmask 0
        %818 = vst.msk [vmem:[%s275] sm:$0x1] %vm817, %v816
        %s819 = sand.u32 %s115, 1
        %s820 = scalar_lea.sflag [#allocation3], %s819
        %s821 = sand.u32 %s115, 1
        %s822 = smul.addr %s821, 16
        %s823 = scalar_lea.vmem [#allocation2], %s822
        %s824 = sand.u32 %s143, 1
        %s825 = scalar_lea.sflag [#allocation5], %s824
        %s826 = sand.u32 %s143, 1
        %s827 = smul.addr %s826, 2
        %s828 = scalar_lea.vmem [#allocation4], %s827
        %p829 = scmp.lt.s32.totalorder %s27, 1
        %s830 = scalar_select %p829, %s27, 1
        %s831 = scalar_lea.vmem %s5, %s830
        // Predicated region
        $region37: #{tpu_custom_call.1} parent=31 // pred_check
          %p832 = pneg %p125
        $region38: #{tpu_custom_call.1} parent=31 // pred_check_branch
          %834 = sbr.rel (%p832) target = $region40
        $region39: #{tpu_custom_call.1} parent=31 // pred_region
          %s835 = smul.u32 2, %s28
          %s837 = ssub.s32 256, 256
          %838 = vsyncadd %s820, %s837
          %s839 = smul.addr %s27, 2
          %s840 = sadd.s32 %s835, %s839
          %s841 = smul.addr %s840, 128
          %s842 = scalar_lea.hbm %s3, %s841
          %s844 = sshll.u32 %s823, 4
          %s845 = int_to_ptr.vmem [resolvable:$true] %s844
          %847 = dma.vmem_to_hbm [thread:$0]  %s845, 256, %s842, %s820
        $region40: #{tpu_custom_call.1} parent=31 // pred_fallthru
          _
        // Predicated region
        $region41: #{tpu_custom_call.1} parent=31 // pred_check
          %p848 = pneg %p153
        $region42: #{tpu_custom_call.1} parent=31 // pred_check_branch
          %850 = sbr.rel (%p848) target = $region44
        $region43: #{tpu_custom_call.1} parent=31 // pred_region
          %s851 = smul.u32 2, %s28
          %s853 = ssub.s32 32, 32
          %854 = vsyncadd %s825, %s853
          %s855 = smul.addr %s27, 2
          %s856 = sadd.s32 %s851, %s855
          %s857 = smul.addr %s856, 16
          %s858 = scalar_lea.hbm %s4, %s857
          %s860 = sshll.u32 %s828, 4
          %s861 = int_to_ptr.vmem [resolvable:$true] %s860
          %863 = dma.vmem_to_hbm [thread:$0]  %s861, 32, %s858, %s825
        $region44: #{tpu_custom_call.1} parent=31 // pred_fallthru
          _
        // Predicated region
        $region45: #{tpu_custom_call.1} parent=31 // pred_check
          %p864 = pneg %p179
        $region46: #{tpu_custom_call.1} parent=31 // pred_check_branch
          %866 = sbr.rel (%p864) target = $region48
        $region47: #{tpu_custom_call.1} parent=31 // pred_region
          _
        $region48: #{tpu_custom_call.1} parent=31 // pred_fallthru
          _
      $region32: #{tpu_custom_call.1} parent=5 // pred_fallthru
        _
      %p867 = scmp.le.s32.totalorder 2, %s18
      // Predicated region
      $region49: #{tpu_custom_call.1} parent=5 // pred_check
        %p868 = pneg %p867
      $region50: #{tpu_custom_call.1} parent=5 // pred_check_branch
        %870 = sbr.rel (%p868) target = $region52
      $region51: #{tpu_custom_call.1} parent=5 // pred_region
        %s871 = ssub.s32 %s18, 2
        // Predicated region
        $region53: #{tpu_custom_call.1} parent=51 // pred_check
          %p872 = pneg %p131
        $region54: #{tpu_custom_call.1} parent=51 // pred_check_branch
          %874 = sbr.rel (%p872) target = $region56
        $region55: #{tpu_custom_call.1} parent=51 // pred_region
          %s875 = sand.u32 %s116, 1
          %s876 = scalar_lea.sflag [#allocation3], %s875
          %s877 = sand.u32 %s116, 1
          %s878 = smul.addr %s877, 16
          %s879 = scalar_lea.vmem [#allocation2], %s878
          %880 = dma.done %s876, 256
        $region56: #{tpu_custom_call.1} parent=51 // pred_fallthru
          _
        // Predicated region
        $region57: #{tpu_custom_call.1} parent=51 // pred_check
          %p881 = pneg %p159
        $region58: #{tpu_custom_call.1} parent=51 // pred_check_branch
          %883 = sbr.rel (%p881) target = $region60
        $region59: #{tpu_custom_call.1} parent=51 // pred_region
          %s884 = sand.u32 %s144, 1
          %s885 = scalar_lea.sflag [#allocation5], %s884
          %s886 = sand.u32 %s144, 1
          %s887 = smul.addr %s886, 2
          %s888 = scalar_lea.vmem [#allocation4], %s887
          %889 = dma.done %s885, 32
        $region60: #{tpu_custom_call.1} parent=51 // pred_fallthru
          _
        // Predicated region
        $region61: #{tpu_custom_call.1} parent=51 // pred_check
          %p890 = pneg %p185
        $region62: #{tpu_custom_call.1} parent=51 // pred_check_branch
          %892 = sbr.rel (%p890) target = $region64
        $region63: #{tpu_custom_call.1} parent=51 // pred_region
          %p893 = scmp.lt.s32.totalorder %s29, 1
          %s894 = scalar_select %p893, %s29, 1
          %s895 = scalar_lea.vmem %s5, %s894
        $region64: #{tpu_custom_call.1} parent=51 // pred_fallthru
          _
      $region52: #{tpu_custom_call.1} parent=5 // pred_fallthru
        _
    $region6: #{tpu_custom_call.1} parent=1 // loop_footer
      %s22 = sadd.s32 1, %s18
    $region7: #{tpu_custom_call.1} parent=1 // loop_footer_branch
      %17 = sbr.rel target = $region3
    $region8: #{tpu_custom_call.1} parent=1 // loop_exit
      _
    %896 = vsyncpa [#allocation3], 1
    %s897 = scalar_lea.sflag [#allocation3], 1
    %898 = vsyncpa %s897, 1
    %899 = vsyncpa [#allocation5], 1
    %s900 = scalar_lea.sflag [#allocation5], 1
    %901 = vsyncpa %s900, 1

</llo_original>
